<compile_context>
chip_gen: v5e
topology: v5e:2x2
jax: 0.10.0
libtpu: 0.0.40
codegen_flags: <defaults>
</compile_context>

<pallas_src>
import math
import functools

import jax
import jax.numpy as jnp
from jax import lax
from jax.experimental import pallas as pl
from jax.experimental.pallas import tpu as pltpu


MASK_VALUE = -1e30  # finite "-inf" used inside the kernel (keeps online softmax NaN-free)


def _pick_tile(dim, cap, align):
    """Largest tile <= cap that divides `dim` and is a multiple of `align`,
    falling back to the full dimension (always valid per BlockSpec rules)."""
    if dim <= cap:
        return dim
    t = (cap // align) * align
    while t >= align:
        if dim % t == 0:
            return t
        t -= align
    return dim


# ----------------------------------------------------------------------------
# Tiled linear kernel: y = x @ w + b
# ----------------------------------------------------------------------------

def _linear_kernel(x_ref, w_ref, b_ref, o_ref, acc_ref):
    @pl.when(pl.program_id(2) == 0)
    def _():
        acc_ref[...] = jnp.zeros_like(acc_ref)

    acc_ref[...] += jnp.dot(x_ref[...], w_ref[...],
                            preferred_element_type=jnp.float32)

    @pl.when(pl.program_id(2) == pl.num_programs(2) - 1)
    def _():
        # bias added once, only in the finalize branch (no per-K-step broadcast)
        o_ref[...] = (acc_ref[...] + b_ref[...]).astype(o_ref.dtype)


def linear(x2d, w_t, b, *, tm_cap=256, tn_cap=512, tk_cap=512):
    """y = x2d @ w_t + b via a tiled / pipelined Pallas kernel."""
    M, K = x2d.shape
    N = w_t.shape[1]
    tm = _pick_tile(M, tm_cap, 8)
    tn = _pick_tile(N, tn_cap, 128)
    tk = _pick_tile(K, tk_cap, 128)
    grid = (M // tm, N // tn, K // tk)
    cost = pl.CostEstimate(
        flops=2 * M * N * K,
        transcendentals=0,
        bytes_accessed=4 * (M * K + K * N + M * N + N),
    )
    return pl.pallas_call(
        _linear_kernel,
        out_shape=jax.ShapeDtypeStruct((M, N), x2d.dtype),
        grid_spec=pltpu.PrefetchScalarGridSpec(
            num_scalar_prefetch=0,
            grid=grid,
            in_specs=[
                pl.BlockSpec((tm, tk), lambda i, j, k: (i, k)),
                pl.BlockSpec((tk, tn), lambda i, j, k: (k, j)),
                pl.BlockSpec((1, tn), lambda i, j, k: (0, j)),
            ],
            out_specs=pl.BlockSpec((tm, tn), lambda i, j, k: (i, j)),
            scratch_shapes=[pltpu.VMEM((tm, tn), jnp.float32)],
        ),
        compiler_params=pltpu.CompilerParams(
            dimension_semantics=("parallel", "parallel", "arbitrary")),
        cost_estimate=cost,
    )(x2d, w_t, b.reshape(1, N))


# ----------------------------------------------------------------------------
# Flash-style multi-head attention kernel (heads processed in-kernel)
# ----------------------------------------------------------------------------

def _flash_attn_kernel(q_ref, k_ref, v_ref, am_ref, kpm_ref, o_ref,
                       m_sc, l_sc, acc_sc, *, num_heads, head_dim, scale):
    ki = pl.program_id(2)

    @pl.when(ki == 0)
    def _():
        m_sc[...] = jnp.full(m_sc.shape, MASK_VALUE, m_sc.dtype)
        l_sc[...] = jnp.zeros_like(l_sc)
        acc_sc[...] = jnp.zeros_like(acc_sc)

    q = q_ref[0]                                  # (tq, E)
    k = k_ref[0]                                  # (tk, E)
    v = v_ref[0]                                  # (tk, E)
    # combined mask tile (True = masked); built from the small per-tile mask
    # inputs -- never a (B*H, Sq, Sk) bias tensor in HBM.
    masked = jnp.logical_or(am_ref[...] > 0.5, kpm_ref[0] > 0.5)   # (tq, tk)

    for h in range(num_heads):
        lo = h * head_dim
        qh = q[:, lo:lo + head_dim]               # (tq, Dh)
        kh = k[:, lo:lo + head_dim]               # (tk, Dh)
        vh = v[:, lo:lo + head_dim]               # (tk, Dh)

        # q @ k^T contracting the last axes directly (no K transpose)
        s = lax.dot_general(qh, kh, (((1,), (1,)), ((), ())),
                            preferred_element_type=jnp.float32) * scale
        s = jnp.where(masked, MASK_VALUE, s)

        m_prev = m_sc[h]                          # (tq, 1)
        m_curr = jnp.max(s, axis=-1, keepdims=True)
        m_next = jnp.maximum(m_prev, m_curr)
        alpha = jnp.exp(m_prev - m_next)
        p = jnp.exp(s - m_next)
        p = jnp.where(masked, 0.0, p)             # robust even for fully-masked tiles
        l_sc[h] = alpha * l_sc[h] + jnp.sum(p, axis=-1, keepdims=True)
        acc_sc[h] = alpha * acc_sc[h] + jnp.dot(p, vh,
                                                preferred_element_type=jnp.float32)
        m_sc[h] = m_next

    @pl.when(ki == pl.num_programs(2) - 1)
    def _():
        # Normalize the (tq, Dh) accumulators (not the (tq, tk) prob tiles) and
        # write a single lane-dense (tq, E) output tile.
        parts = []
        for h in range(num_heads):
            # NOTE: approx=True would route this through the EUP; kept exact
            # since it runs once per output tile and keeps tight fp32 parity.
            inv_l = pl.reciprocal(l_sc[h], approx=False)
            parts.append(acc_sc[h] * inv_l)
        o_ref[0] = jnp.concatenate(parts, axis=-1).astype(o_ref.dtype)


def flash_attention(q, k, v, attn_mask_f, kpm_f, num_heads, *,
                    tq_cap=256, tk_cap=512):
    """q/k/v: (B, S, E) ; attn_mask_f: (Sq, Sk) float ; kpm_f: (B, 1, Sk) float."""
    B, Sq, E = q.shape
    Sk = k.shape[1]
    Dh = E // num_heads
    tq = _pick_tile(Sq, tq_cap, 8)
    tk = _pick_tile(Sk, tk_cap, 128)
    grid = (B, Sq // tq, Sk // tk)
    # The PyTorch module scales q by Dh**-0.5 AND divides scores by sqrt(Dh):
    # combined factor is 1/Dh, applied once here.
    scale = 1.0 / float(Dh)
    kern = functools.partial(_flash_attn_kernel, num_heads=num_heads,
                             head_dim=Dh, scale=scale)
    cost = pl.CostEstimate(
        flops=4 * B * num_heads * Sq * Sk * Dh,
        transcendentals=B * num_heads * Sq * Sk,
        bytes_accessed=4 * (2 * B * Sq * E + 2 * B * Sk * E + Sq * Sk + B * Sk),
    )
    return pl.pallas_call(
        kern,
        out_shape=jax.ShapeDtypeStruct((B, Sq, E), q.dtype),
        grid_spec=pltpu.PrefetchScalarGridSpec(
            num_scalar_prefetch=0,
            grid=grid,
            in_specs=[
                pl.BlockSpec((1, tq, E), lambda b, qi, ki: (b, qi, 0)),
                pl.BlockSpec((1, tk, E), lambda b, qi, ki: (b, ki, 0)),
                pl.BlockSpec((1, tk, E), lambda b, qi, ki: (b, ki, 0)),
                pl.BlockSpec((tq, tk), lambda b, qi, ki: (qi, ki)),
                pl.BlockSpec((1, 1, tk), lambda b, qi, ki: (b, 0, ki)),
            ],
            out_specs=pl.BlockSpec((1, tq, E), lambda b, qi, ki: (b, qi, 0)),
            scratch_shapes=[
                pltpu.VMEM((num_heads, tq, 1), jnp.float32),   # running max  m
                pltpu.VMEM((num_heads, tq, 1), jnp.float32),   # running sum  l
                pltpu.VMEM((num_heads, tq, Dh), jnp.float32),  # output accum
            ],
        ),
        compiler_params=pltpu.CompilerParams(
            dimension_semantics=("parallel", "parallel", "arbitrary")),
        cost_estimate=cost,
    )(q, k, v, attn_mask_f, kpm_f)


# ----------------------------------------------------------------------------
# MultiHeadAttention forward (parameters + glue in plain JAX)
# ----------------------------------------------------------------------------

def init_mha_params(key, embed_dim):
    """Xavier-uniform weights, zero biases (matches _reset_parameters)."""
    bound = math.sqrt(6.0 / (embed_dim + embed_dim))
    ks = jax.random.split(key, 4)

    def w(k):
        # PyTorch Linear weight is (out, in).
        return jax.random.uniform(k, (embed_dim, embed_dim),
                                  minval=-bound, maxval=bound, dtype=jnp.float32)

    return {
        "q_w": w(ks[0]), "k_w": w(ks[1]), "v_w": w(ks[2]), "o_w": w(ks[3]),
        "q_b": jnp.zeros((embed_dim,), jnp.float32),
        "k_b": jnp.zeros((embed_dim,), jnp.float32),
        "v_b": jnp.zeros((embed_dim,), jnp.float32),
        "o_b": jnp.zeros((embed_dim,), jnp.float32),
    }


def multi_head_attention(params, query, key, value, num_heads,
                         key_padding_mask=None, attn_mask=None):
    """
    query/key/value: (B, S, E) float32
    key_padding_mask: optional (B, Sk) bool, True = masked
    attn_mask:        optional (Sq, Sk) bool/float, True/nonzero = masked
    Returns: (B, Sq, E)
    """
    B, Sq, E = query.shape
    Sk = key.shape[1]
    Sv = value.shape[1]

    # Projections (Pallas tiled matmul kernels). q is NOT pre-scaled here: the
    # combined 1/head_dim factor lives inside the attention kernel.
    # NOTE: q/k/v projections read distinct inputs in general (cross-attention
    # capable module), so a (E,3E) fused weight only helps for self-attention.
    q = linear(query.reshape(B * Sq, E), params["q_w"].T, params["q_b"]).reshape(B, Sq, E)
    k = linear(key.reshape(B * Sk, E), params["k_w"].T, params["k_b"]).reshape(B, Sk, E)
    v = linear(value.reshape(B * Sv, E), params["v_w"].T, params["v_b"]).reshape(B, Sv, E)
    # q/k/v stay in (B, S, E) layout; heads are split inside the attention
    # kernel, so no (B,H,S,Dh) transpose round trips through HBM.

    # Small float masks (1.0 = masked) instead of a (B*H, Sq, Sk) bias tensor.
    if attn_mask is not None:
        am = attn_mask
        if am.dtype != jnp.bool_:
            am = am.astype(bool)          # matches the module's float->bool cast
        am_f = am.astype(jnp.float32)
    else:
        am_f = jnp.zeros((Sq, Sk), jnp.float32)
    if key_padding_mask is not None:
        kpm_f = key_padding_mask.astype(jnp.float32).reshape(B, 1, Sk)
    else:
        kpm_f = jnp.zeros((B, 1, Sk), jnp.float32)

    attn_out = flash_attention(q, k, v, am_f, kpm_f, num_heads)   # (B, Sq, E)

    out = linear(attn_out.reshape(B * Sq, E), params["o_w"].T, params["o_b"])
    return out.reshape(B, Sq, E)


# ----------------------------------------------------------------------------
# Reference (pure JAX, mirrors the PyTorch module exactly) for verification
# ----------------------------------------------------------------------------

def mha_reference(params, query, key, value, num_heads,
                  key_padding_mask=None, attn_mask=None):
    B, Sq, E = query.shape
    Sk = key.shape[1]
    H = num_heads
    Dh = E // H
    scaling = float(Dh) ** -0.5
    q = (query @ params["q_w"].T + params["q_b"]) * scaling
    k = key @ params["k_w"].T + params["k_b"]
    v = value @ params["v_w"].T + params["v_b"]
    q = q.reshape(B, Sq, H, Dh).transpose(0, 2, 1, 3)
    k = k.reshape(B, Sk, H, Dh).transpose(0, 2, 1, 3)
    v = v.reshape(B, Sk, H, Dh).transpose(0, 2, 1, 3)
    scores = jnp.einsum("bhqd,bhkd->bhqk", q, k) / math.sqrt(Dh)
    if key_padding_mask is not None:
        scores = jnp.where(key_padding_mask[:, None, None, :], -jnp.inf, scores)
    if attn_mask is not None:
        am = attn_mask if attn_mask.dtype == jnp.bool_ else attn_mask.astype(bool)
        scores = jnp.where(am[None, None, :, :], -jnp.inf, scores)
    w = jax.nn.softmax(scores, axis=-1)
    o = jnp.einsum("bhqk,bhkd->bhqd", w, v)
    o = o.transpose(0, 2, 1, 3).reshape(B, Sq, E)
    return o @ params["o_w"].T + params["o_b"]


# ----------------------------------------------------------------------------
# main
# ----------------------------------------------------------------------------

if __name__ == "__main__":
    B, S, E, H = 2, 8, 32, 4

    root = jax.random.PRNGKey(0)
    kp, kq, kk, kv = jax.random.split(root, 4)

    params = init_mha_params(kp, E)
    query = jax.random.normal(kq, (B, S, E), dtype=jnp.float32)
    key = jax.random.normal(kk, (B, S, E), dtype=jnp.float32)
    value = jax.random.normal(kv, (B, S, E), dtype=jnp.float32)

    # causal attn_mask (True = masked) + pad out the last two keys of batch 1
    attn_mask = jnp.triu(jnp.ones((S, S), dtype=bool), k=1)
    key_padding_mask = jnp.zeros((B, S), dtype=bool).at[1, S - 2:].set(True)

    out = multi_head_attention(params, query, key, value, H,
                               key_padding_mask=key_padding_mask,
                               attn_mask=attn_mask)
    out = jax.block_until_ready(out)

    ref = mha_reference(params, query, key, value, H,
                        key_padding_mask=key_padding_mask,
                        attn_mask=attn_mask)
    assert out.shape == (B, S, E)
    max_diff = float(jnp.max(jnp.abs(out - ref)))
    assert jnp.allclose(out, ref, atol=5e-4, rtol=5e-4), \
        f"mismatch vs reference (max abs diff {max_diff})"

    print("KERNEL_OK")
</pallas_src>

<mosaic_0001>
module attributes {stable_mosaic.version = 11 : i64} {
  func.func @_linear_kernel(%arg0: i32, %arg1: i32, %arg2: i32, %arg3: memref<16x32xf32, #tpu.memory_space<vmem>>, %arg4: memref<32x32xf32, #tpu.memory_space<vmem>>, %arg5: memref<1x32xf32, #tpu.memory_space<vmem>>, %arg6: memref<16x32xf32, #tpu.memory_space<vmem>>, %arg7: memref<16x32xf32, #tpu.memory_space<vmem>>) attributes {dimension_semantics = [#tpu.dimension_semantics<parallel>, #tpu.dimension_semantics<parallel>, #tpu.dimension_semantics<arbitrary>], iteration_bounds = array<i64: 1, 1, 1>, scalar_prefetch = 0 : i64, scratch_operands = 1 : i64, tpu.core_type = #tpu.core_type<tc>, window_params = [{transform_indices = @transform_0, window_bounds = array<i64: 16, 32>}, {transform_indices = @transform_1, window_bounds = array<i64: 32, 32>}, {transform_indices = @transform_2, window_bounds = array<i64: 1, 32>}, {transform_indices = @transform_3, window_bounds = array<i64: 16, 32>}]} {
    %c0_i32 = arith.constant 0 : i32
    %0 = arith.cmpi eq, %arg2, %c0_i32 : i32
    %1 = arith.extui %0 : i1 to i32
    %c0_i32_0 = arith.constant 0 : i32
    %2 = arith.cmpi ne, %1, %c0_i32_0 : i32
    scf.if %2 {
      %cst_10 = arith.constant 0.000000e+00 : f32
      %12 = vector.broadcast %cst_10 : f32 to vector<16x32xf32>
      %c0_11 = arith.constant 0 : index
      %c0_12 = arith.constant 0 : index
      %13 = vector.load %arg7[%c0_11, %c0_12] : memref<16x32xf32, #tpu.memory_space<vmem>>, vector<16x32xf32>
      tpu.vector_store %arg7[%c0_11, %c0_12], %12 {strides = array<i32>} : memref<16x32xf32, #tpu.memory_space<vmem>>, vector<16x32xf32>,
    } else {
    }
    %c0 = arith.constant 0 : index
    %c0_1 = arith.constant 0 : index
    %3 = vector.load %arg7[%c0, %c0_1] : memref<16x32xf32, #tpu.memory_space<vmem>>, vector<16x32xf32>
    %c0_2 = arith.constant 0 : index
    %c0_3 = arith.constant 0 : index
    %4 = vector.load %arg3[%c0_2, %c0_3] : memref<16x32xf32, #tpu.memory_space<vmem>>, vector<16x32xf32>
    %c0_4 = arith.constant 0 : index
    %c0_5 = arith.constant 0 : index
    %5 = vector.load %arg4[%c0_4, %c0_5] : memref<32x32xf32, #tpu.memory_space<vmem>>, vector<32x32xf32>
    %cst = arith.constant dense<0.000000e+00> : vector<16x32xf32>
    %6 = tpu.matmul %4, %5, %cst {dimension_numbers = #tpu.dot_dimension_numbers<[1], [0], [0], [1], [0, 0, 1, 1], [], []>} : vector<16x32xf32>, vector<32x32xf32>, vector<16x32xf32> -> vector<16x32xf32>
    %7 = arith.addf %3, %6 : vector<16x32xf32>
    %c0_6 = arith.constant 0 : index
    %c0_7 = arith.constant 0 : index
    %8 = vector.load %arg7[%c0_6, %c0_7] : memref<16x32xf32, #tpu.memory_space<vmem>>, vector<16x32xf32>
    tpu.vector_store %arg7[%c0_6, %c0_7], %7 {strides = array<i32>} : memref<16x32xf32, #tpu.memory_space<vmem>>, vector<16x32xf32>,
    %c0_i32_8 = arith.constant 0 : i32
    %9 = arith.cmpi eq, %arg2, %c0_i32_8 : i32
    %10 = arith.extui %9 : i1 to i32
    %c0_i32_9 = arith.constant 0 : i32
    %11 = arith.cmpi ne, %10, %c0_i32_9 : i32
    scf.if %11 {
      %c0_10 = arith.constant 0 : index
      %c0_11 = arith.constant 0 : index
      %12 = vector.load %arg7[%c0_10, %c0_11] : memref<16x32xf32, #tpu.memory_space<vmem>>, vector<16x32xf32>
      %c0_12 = arith.constant 0 : index
      %c0_13 = arith.constant 0 : index
      %13 = vector.load %arg5[%c0_12, %c0_13] : memref<1x32xf32, #tpu.memory_space<vmem>>, vector<1x32xf32>
      %14 = vector.broadcast %13 : vector<1x32xf32> to vector<16x32xf32>
      %15 = arith.addf %12, %14 : vector<16x32xf32>
      %c0_14 = arith.constant 0 : index
      %c0_15 = arith.constant 0 : index
      %16 = vector.load %arg6[%c0_14, %c0_15] : memref<16x32xf32, #tpu.memory_space<vmem>>, vector<16x32xf32>
      tpu.vector_store %arg6[%c0_14, %c0_15], %15 {strides = array<i32>} : memref<16x32xf32, #tpu.memory_space<vmem>>, vector<16x32xf32>,
    } else {
    }
    return
  }
  func.func @transform_0(%arg0: i32, %arg1: i32, %arg2: i32) -> (i32, i32) {
    %c0_i32 = arith.constant 0 : i32
    return %arg0, %arg2 : i32, i32
  }
  func.func @transform_1(%arg0: i32, %arg1: i32, %arg2: i32) -> (i32, i32) {
    %c0_i32 = arith.constant 0 : i32
    return %arg2, %arg1 : i32, i32
  }
  func.func @transform_2(%arg0: i32, %arg1: i32, %arg2: i32) -> (i32, i32) {
    %c0_i32 = arith.constant 0 : i32
    %c0_i32_0 = arith.constant 0 : i32
    return %c0_i32, %arg1 : i32, i32
  }
  func.func @transform_3(%arg0: i32, %arg1: i32, %arg2: i32) -> (i32, i32) {
    %c0_i32 = arith.constant 0 : i32
    return %arg0, %arg1 : i32, i32
  }
}

</mosaic_0001>

<llo_original>
// kernel: tpu_custom_call.1
$region0: #{tpu_custom_call.1}
  #allocation0 [shape = 'u32[]', space=smem, size = 0x4, offset = 0x4, fixed_abs, tag = 'smem constant byte address 0x4 - core index']
  #allocation1 [shape = 'u32[72,128]{1,0:T(1,128)}', space=vmem, size = 0x9000, scoped, tag = 'internal scratch']
  #allocation2 [shape = 'f32[16,32]{1,0:T(8,128)}', space=vmem, size = 0x2000, scoped, tag = 'scratch operand']
  %s0 = inlined_call_operand.hbm [shape: f32[16,32], index: 0, kind: input, shape index: {}]
  %s1 = inlined_call_operand.hbm [shape: f32[32,32], index: 1, kind: input, shape index: {}]
  %s2 = inlined_call_operand.vmem [shape: f32[1,32], index: 2, kind: input, shape index: {}]
  %s3 = inlined_call_operand.hbm [shape: f32[16,32], index: 3, kind: output, shape index: {}]
  %s4 = sld [smem:[#allocation0]]
  $region38: #{tpu_custom_call.1} parent=0
    _
  %s6 = ssub.s32 1, %s4
  %s7 = scalar_select 0, %s6, %s4
  $region1: #{tpu_custom_call.1} parent=0
    #allocation3 [shape = 'u8[8192]{0}', space=vmem, size = 0x2000, scoped, tag = 'input window, operand 0, single buffered']
    #allocation4 [shape = 's32[1]{0}', space=sflag, size = 0x4, scoped, tag = 'scoped memory for tpu_custom_call.1']
    #allocation5 [shape = 's32[1]{0}', space=sflag, size = 0x4, scoped, tag = 'scoped memory for tpu_custom_call.1']
    #allocation6 [shape = 'u8[16384]{0}', space=vmem, size = 0x4000, scoped, tag = 'input window, operand 1, single buffered']
    #allocation7 [shape = 's32[1]{0}', space=sflag, size = 0x4, scoped, tag = 'scoped memory for tpu_custom_call.1']
    #allocation8 [shape = 'u8[8192]{0}', space=vmem, size = 0x2000, scoped, tag = 'output window, operand 0, single buffered']
    %8 = vsyncpa [#allocation4], 0
    %9 = vsyncpa [#allocation7], 0
    %10 = vsyncpa [#allocation5], 0
    // Predicated region
    $region2: #{tpu_custom_call.1} parent=1 // pred_check
      _
    $region3: #{tpu_custom_call.1} parent=1 // pred_check_branch
      %12 = sbr.rel (0) target = $region5
    $region4: #{tpu_custom_call.1} parent=1 // pred_region
      %14 = vsyncadd [#allocation4], 0
      %s15 = sshll.u32 %s0, 4
      %s16 = int_to_ptr.hbm [resolvable:$true] %s15
      %s17 = sshll.u32 [#allocation3], 4
      %s18 = int_to_ptr.vmem [resolvable:$true] %s17
      %23 = dma.hbm_to_vmem [thread:$0]  %s16, 256, %s18, [#allocation4], 128, 128, 8
    $region5: #{tpu_custom_call.1} parent=1 // pred_fallthru
      _
    // Predicated region
    $region6: #{tpu_custom_call.1} parent=1 // pred_check
      _
    $region7: #{tpu_custom_call.1} parent=1 // pred_check_branch
      %25 = sbr.rel (0) target = $region9
    $region8: #{tpu_custom_call.1} parent=1 // pred_region
      %27 = vsyncadd [#allocation7], 0
      %s28 = sshll.u32 %s1, 4
      %s29 = int_to_ptr.hbm [resolvable:$true] %s28
      %s30 = sshll.u32 [#allocation6], 4
      %s31 = int_to_ptr.vmem [resolvable:$true] %s30
      %36 = dma.hbm_to_vmem [thread:$0]  %s29, 512, %s31, [#allocation7], 128, 128, 8
    $region9: #{tpu_custom_call.1} parent=1 // pred_fallthru
      _
    // Predicated region
    $region10: #{tpu_custom_call.1} parent=1 // pred_check
      _
    $region11: #{tpu_custom_call.1} parent=1 // pred_check_branch
      %38 = sbr.rel (0) target = $region13
    $region12: #{tpu_custom_call.1} parent=1 // pred_region
      _
    $region13: #{tpu_custom_call.1} parent=1 // pred_fallthru
      _
    // Predicated region
    $region14: #{tpu_custom_call.1} parent=1 // pred_check
      _
    $region15: #{tpu_custom_call.1} parent=1 // pred_check_branch
      %40 = sbr.rel (0) target = $region17
    $region16: #{tpu_custom_call.1} parent=1 // pred_region
      %42 = dma.done [#allocation4], 256
    $region17: #{tpu_custom_call.1} parent=1 // pred_fallthru
      _
    // Predicated region
    $region18: #{tpu_custom_call.1} parent=1 // pred_check
      _
    $region19: #{tpu_custom_call.1} parent=1 // pred_check_branch
      %44 = sbr.rel (0) target = $region21
    $region20: #{tpu_custom_call.1} parent=1 // pred_region
      %46 = dma.done [#allocation7], 512
    $region21: #{tpu_custom_call.1} parent=1 // pred_fallthru
      _
    %p47 = scmp.eq.s32.totalorder 0, 0
    // Predicated region
    $region22: #{tpu_custom_call.1} parent=1 // pred_check
      %p48 = pneg %p47
    $region23: #{tpu_custom_call.1} parent=1 // pred_check_branch
      %50 = sbr.rel (%p48) target = $region25
    $region24: #{tpu_custom_call.1} parent=1 // pred_region
      %vm51 = vcmask 261120
      %52 = vst.msk [vmem:[#allocation2] sm:$0xff] %vm51, 0.0
      %53 = vst.msk [vmem:[#allocation2 + $0x8] sm:$0xff] %vm51, 0.0
    $region25: #{tpu_custom_call.1} parent=1 // pred_fallthru
      _
    %v54 = vld [vmem:[#allocation2] sm:$0xff]
    %v55 = vld [vmem:[#allocation2 + $0x8] sm:$0xff]
    %v56 = vld [vmem:[#allocation3] sm:$0xff]
    %v57 = vld [vmem:[#allocation3 + $0x8] sm:$0xff]
    %v58 = vld [vmem:[#allocation6] sm:$0xff]
    %v59 = vld [vmem:[#allocation6 + $0x8] sm:$0xff]
    %v60 = vld [vmem:[#allocation6 + $0x10] sm:$0xff]
    %v61 = vld [vmem:[#allocation6 + $0x18] sm:$0xff]
    %vm62 = vcmask 261120
    %v64 = vsel %vm62, %v56, 0
    %v67 = vsel %vm62, %v57, 0
    %69 = vmatpush.msra.mxu0 0.0
    %70 = vmatpush.msra.mxu0 0.0
    %71 = vmatpush.msra.mxu0 0.0
    %72 = vmatpush.msra.mxu0 0.0
    %73 = vmatpush.msra.mxu0 0.0
    %74 = vmatpush.msra.mxu0 0.0
    %75 = vmatpush.msra.mxu0 0.0
    %76 = vmatpush.msra.mxu0 0.0
    %77 = vmatpush.msra.mxu0 0.0
    %78 = vmatpush.msra.mxu0 0.0
    %79 = vmatpush.msra.mxu0 0.0
    %80 = vmatpush.msra.mxu0 0.0
    %81 = vmatpush.msra.mxu0 %v61
    %82 = vmatpush.msra.mxu0 %v60
    %83 = vmatpush.msra.mxu0 %v59
    %84 = vmatpush.msra.mxu0 %v58
    %85 = vmatmul.f32.gmra.mxu0 %v64
    %v86 = vpop.f32.mrf.mxu0
    %v87 = vadd.f32 0.0, %v86
    %88 = vmatmul.f32.gmra.mxu0 %v67
    %v89 = vpop.f32.mrf.mxu0
    %v90 = vadd.f32 0.0, %v89
    %91 = vdwg.mxu0
    %v92 = vadd.f32 %v54, %v87
    %v93 = vadd.f32 %v55, %v90
    %94 = vst.msk [vmem:[#allocation2] sm:$0xff] %vm62, %v92
    %95 = vst.msk [vmem:[#allocation2 + $0x8] sm:$0xff] %vm62, %v93
    // Predicated region
    $region26: #{tpu_custom_call.1} parent=1 // pred_check
      %p96 = pneg %p47
    $region27: #{tpu_custom_call.1} parent=1 // pred_check_branch
      %98 = sbr.rel (%p96) target = $region29
    $region28: #{tpu_custom_call.1} parent=1 // pred_region
      %v99 = vld [vmem:[#allocation2] sm:$0xff]
      %v100 = vld [vmem:[#allocation2 + $0x8] sm:$0xff]
      %v101 = vld [vmem:[%s2] sm:$0x1]
      %v103 = vperm.slane %v101, 0
      %v105 = vadd.f32 %v99, %v103
      %v106 = vadd.f32 %v100, %v103
      %107 = vst.msk [vmem:[#allocation8] sm:$0xff] %vm62, %v105
      %108 = vst.msk [vmem:[#allocation8 + $0x8] sm:$0xff] %vm62, %v106
    $region29: #{tpu_custom_call.1} parent=1 // pred_fallthru
      _
    // Predicated region
    $region30: #{tpu_custom_call.1} parent=1 // pred_check
      _
    $region31: #{tpu_custom_call.1} parent=1 // pred_check_branch
      %110 = sbr.rel (0) target = $region33
    $region32: #{tpu_custom_call.1} parent=1 // pred_region
      %112 = vsyncadd [#allocation5], 0
      %s113 = sshll.u32 [#allocation8], 4
      %s114 = int_to_ptr.vmem [resolvable:$true] %s113
      %s115 = sshll.u32 %s3, 4
      %s116 = int_to_ptr.hbm [resolvable:$true] %s115
      %121 = dma.vmem_to_hbm [thread:$0]  %s114, 256, %s116, [#allocation5], 128, 128, 8
    $region33: #{tpu_custom_call.1} parent=1 // pred_fallthru
      _
    // Predicated region
    $region34: #{tpu_custom_call.1} parent=1 // pred_check
      _
    $region35: #{tpu_custom_call.1} parent=1 // pred_check_branch
      %123 = sbr.rel (0) target = $region37
    $region36: #{tpu_custom_call.1} parent=1 // pred_region
      %125 = dma.done [#allocation5], 256
    $region37: #{tpu_custom_call.1} parent=1 // pred_fallthru
      _
    %126 = vsyncpa [#allocation4], 1
    %127 = vsyncpa [#allocation7], 1
    %128 = vsyncpa [#allocation5], 1

</llo_original>
